<compile_context>
chip_gen: v7x
topology: tpu7x:2x2x1
jax: 0.10.0
libtpu: 0.0.40
codegen_flags: <defaults>
</compile_context>

<pallas_src>
import functools

import jax
import jax.numpy as jnp
import numpy as np
from jax.experimental import pallas as pl
from jax.experimental.pallas import tpu as pltpu


# ----------------------------------------------------------------------------
# Synthetic DAG (stands in for g = (x, edge_index, edge_attr))
#   0: ip                    (input, dim = INPUT_DIM)
#   1: relu   hidden=32      parents=[0]
#   2: tanh   hidden=32      parents=[0]
#   3: crelu  hidden=16      parents=[1, 2]   -> out_dim = 32
#   4: op     hidden=8       parents=[3]      -> network output
# ----------------------------------------------------------------------------
INPUT_DIM = 16
NODES = [0, 1, 2, 3, 4]
NODE_TYPE = {1: "relu", 2: "tanh", 3: "crelu", 4: "linear"}   # 'op' == linear
HIDDEN = {1: 32, 2: 32, 3: 16, 4: 8}
FATHER = {0: [], 1: [0], 2: [0], 3: [1, 2], 4: [3]}
CHILD = {0: [1, 2], 1: [3], 2: [3], 3: [4], 4: []}

LANE = 128                      # one 128-lane slab slot per intermediate node
CHEAP_ACTS = ("linear", "relu", "leaky-relu")   # pure-VPU acts, 0 -> 0


def _round_up(n, m):
    return ((n + m - 1) // m) * m


def _node_dims():
    out_dim = {0: INPUT_DIM}
    in_dim = {}
    for idx in NODES[1:]:
        in_dim[idx] = sum(out_dim[fa] for fa in FATHER[idx])
        h = HIDDEN[idx]
        out_dim[idx] = 2 * h if NODE_TYPE[idx] == "crelu" else h
    return in_dim, out_dim


# ----------------------------------------------------------------------------
# Activation math (shared by kernel and pure-JAX reference)
# ----------------------------------------------------------------------------
def _apply_act(name, y):
    if name == "linear":
        return y
    if name == "relu":
        return jnp.maximum(y, 0.0)
    if name == "tanh":
        return jnp.tanh(y)
    if name == "leaky-relu":
        return jnp.where(y >= 0.0, y, 0.01 * y)          # torch default slope
    if name == "softplus":
        return jax.nn.softplus(y)
    if name == "elu":
        # clamp exp arg: jnp.where evaluates both branches
        return jnp.where(y > 0.0, y, jnp.exp(jnp.minimum(y, 0.0)) - 1.0)
    if name == "logistic":
        return jax.nn.sigmoid(y)
    raise ValueError(f"unknown act {name}")


# ----------------------------------------------------------------------------
# Fused whole-DAG kernel.
#   x_ref : [tile_b, feat]                   (input node 0)
#   p_ref : [P_rows, 128]                    packed weight/bias slab (static offsets)
#   o_ref : [tile_b, out_w_final]            natural-width final output
#   slab  : [tile_b, n_slots*128] VMEM       intermediate activations
# `plan` is a static Python list: per node, its matmul "segments" (each one weight
# block in p_ref against either x_ref or a contiguous run of slab slots), the bias
# row, the activation, the output slab slot (or final flag) and its real width.
# ----------------------------------------------------------------------------
def _fused_dag_kernel(x_ref, p_ref, o_ref, slab, *, plan):
    x = x_ref[...]
    for node in plan:
        # single (or few) matmul(s): per-parent weight blocks were merged so that
        # a child with several slab parents reads ONE contiguous lane slice.
        y = None
        for seg in node["segments"]:
            if seg["src"] == "x":
                lhs = x
            else:
                c0 = seg["slot_start"] * LANE
                lhs = slab[:, c0:c0 + seg["k"]]
            w = p_ref[seg["row_off"]:seg["row_off"] + seg["k"], :]
            part = jnp.dot(lhs, w, preferred_element_type=jnp.float32)
            y = part if y is None else y + part
        y = y + p_ref[node["b_row"]:node["b_row"] + 1, :]          # [1,128] bias

        act_name = node["act"]          # crelu was folded into W at build time
        h = node["out_w"]               # real output width (<= 128)
        if node["final"]:
            # natural-width output store (last dim == full array dim, legal block)
            o_ref[...] = _apply_act(act_name, y[:, :h])
        else:
            base = node["slot"] * LANE
            if act_name in CHEAP_ACTS:
                # pad lanes of y are exactly 0 and these acts keep 0 -> 0:
                # one full unmasked 128-lane store.
                slab[:, base:base + LANE] = _apply_act(act_name, y)
            else:
                # transcendental: keep EUP work at real width, zero the pad lanes
                slab[:, base:base + h] = _apply_act(act_name, y[:, :h])
                if h < LANE:
                    slab[:, base + h:base + LANE] = jnp.zeros(
                        (y.shape[0], LANE - h), jnp.float32)


# ----------------------------------------------------------------------------
# Static plan + packed parameter slab
# ----------------------------------------------------------------------------
def _build_plan(params):
    _, out_dim = _node_dims()
    last = NODES[-1]
    inter = [i for i in NODES[1:] if i != last]        # nodes that need a slab slot
    slot_of = {n: s for s, n in enumerate(inter)}
    n_slots = max(len(inter), 1)

    rows = []                                          # blocks to vstack -> p slab
    plan = []
    row_ptr = 0

    def _align8():
        nonlocal row_ptr
        rem = (-row_ptr) % 8
        if rem:
            rows.append(np.zeros((rem, LANE), np.float32))
            row_ptr += rem

    for idx in NODES[1:]:
        act_name = NODE_TYPE[idx]
        w = np.asarray(params[idx]["w"], np.float32)           # [in_dim, h]
        b = np.asarray(params[idx]["b"], np.float32).reshape(1, -1)
        if act_name == "crelu":                                # fold crelu: W'=[W,-W]
            w = np.concatenate([w, -w], axis=1)
            b = np.concatenate([b, -b], axis=1)
            act_name = "relu"
        out_w = w.shape[1]
        final = (idx == last)
        assert out_w <= LANE, "node output wider than one 128-lane slab slot"

        w_pad = np.zeros((w.shape[0], LANE), np.float32)       # N-pad to 128 lanes
        w_pad[:, :out_w] = w
        b_pad = np.zeros((1, LANE), np.float32)
        b_pad[:, :out_w] = b

        # Build matmul segments; merge parents that live in consecutive slab slots.
        segments = []
        fathers = FATHER[idx]
        r = 0                                                  # row cursor in w_pad
        i = 0
        while i < len(fathers):
            fa = fathers[i]
            if fa == 0:                                        # input parent -> x_ref
                k = out_dim[0]
                _align8()
                seg_off = row_ptr
                rows.append(w_pad[r:r + k, :])
                row_ptr += k
                segments.append(dict(src="x", k=k, row_off=seg_off))
                r += k
                i += 1
            else:                                              # run of slab parents
                j = i
                while (j + 1 < len(fathers) and fathers[j + 1] != 0
                       and slot_of[fathers[j + 1]] == slot_of[fathers[j]] + 1):
                    j += 1
                run = fathers[i:j + 1]
                k = len(run) * LANE
                _align8()
                seg_off = row_ptr
                blk = np.zeros((k, LANE), np.float32)          # K-pad per parent slot
                for t, pfa in enumerate(run):
                    pw = out_dim[pfa]
                    blk[t * LANE:t * LANE + pw, :] = w_pad[r:r + pw, :]
                    r += pw
                rows.append(blk)
                row_ptr += k
                segments.append(dict(src="slab", slot_start=slot_of[run[0]],
                                     k=k, row_off=seg_off))
                i = j + 1
        assert r == w.shape[0]

        _align8()
        b_row = row_ptr
        rows.append(b_pad)
        row_ptr += 1

        plan.append(dict(idx=idx, act=act_name, out_w=out_w, final=final,
                         slot=(None if final else slot_of[idx]),
                         segments=tuple(segments), b_row=b_row))

    _align8()
    pslab = np.concatenate(rows, axis=0)
    return plan, jnp.asarray(pslab), n_slots


# ----------------------------------------------------------------------------
# Batch tiling: big tiles (amortize ~0.35us/step), grid >= 2 when batch allows
# (v7x dual TensorCore), row-pad non-divisible batches (never "one huge block").
# ----------------------------------------------------------------------------
def _batch_tiling(batch):
    if batch < 128:
        t = _round_up(max(batch, 1), 8)
        return t, t
    for t in (4096, 2048, 1024, 512, 256, 128):
        if batch >= 2 * t:
            return t, _round_up(batch, t)
    return 128, _round_up(batch, 128)


# ----------------------------------------------------------------------------
# Wrapper: single pallas_call over the whole DAG
# ----------------------------------------------------------------------------
def graph2nn_forward(input_feat, params):
    """Pallas-backed equivalent of Graph2TorchNN.forward (single fused kernel)."""
    x = jnp.asarray(input_feat, jnp.float32)
    batch, feat = x.shape

    plan, pslab, n_slots = _build_plan(params)
    out_w = plan[-1]["out_w"]

    tile_b, padded_b = _batch_tiling(batch)
    if padded_b != batch:
        x = jnp.pad(x, ((0, padded_b - batch), (0, 0)))
    grid = (padded_b // tile_b,)

    # Explicit VMEM budget: slab + double-buffered x/out blocks + parameter slab.
    slab_bytes = tile_b * n_slots * LANE * 4
    io_bytes = 2 * tile_b * feat * 4 + 2 * tile_b * out_w * 4
    par_bytes = 2 * int(pslab.size) * 4
    budget = slab_bytes + io_bytes + par_bytes
    vmem_limit = int(min(max(2 * budget, 16 << 20), 64 << 20))   # <= v7x physical

    kernel = functools.partial(_fused_dag_kernel, plan=plan)

    out = pl.pallas_call(
        kernel,
        out_shape=jax.ShapeDtypeStruct((padded_b, out_w), jnp.float32),
        grid=grid,
        in_specs=[pl.BlockSpec((tile_b, feat), lambda i: (i, 0)),
                  pl.BlockSpec(pslab.shape, lambda i: (0, 0))],     # VMEM-resident
        out_specs=pl.BlockSpec((tile_b, out_w), lambda i: (i, 0)),
        scratch_shapes=[pltpu.VMEM((tile_b, n_slots * LANE), jnp.float32)],
        compiler_params=pltpu.CompilerParams(
            dimension_semantics=("parallel",),
            vmem_limit_bytes=vmem_limit),
    )(x, pslab)

    return out[:batch] if padded_b != batch else out


# ----------------------------------------------------------------------------
# Parameter init (mimics torch.nn.Linear: uniform +-1/sqrt(in_dim))
# ----------------------------------------------------------------------------
def init_params(key):
    in_dim, _ = _node_dims()
    params = {}
    for idx in NODES[1:]:
        key, kw, kb = jax.random.split(key, 3)
        fan_in, h = in_dim[idx], HIDDEN[idx]
        bound = 1.0 / np.sqrt(fan_in)
        params[idx] = {
            "w": jax.random.uniform(kw, (fan_in, h), jnp.float32, -bound, bound),
            "b": jax.random.uniform(kb, (1, h), jnp.float32, -bound, bound),
        }
    return params


# ----------------------------------------------------------------------------
# Pure-JAX reference (mirrors the PyTorch forward, covers ALL activation types)
# ----------------------------------------------------------------------------
def graph2nn_reference(input_feat, params):
    def act_fn(name, y):
        if name == "crelu":
            return jnp.concatenate([jnp.maximum(y, 0.0), jnp.maximum(-y, 0.0)], -1)
        return _apply_act(name, y)

    in_feat = {idx: [] for idx in NODES}
    out_feat = {}
    for idx in NODES:
        if idx == 0:
            out_feat[idx] = jnp.asarray(input_feat, jnp.float32)
        else:
            xx = jnp.concatenate(in_feat[idx], axis=-1)
            y = xx @ params[idx]["w"] + params[idx]["b"]
            out_feat[idx] = act_fn(NODE_TYPE[idx], y)
        for chi in CHILD[idx]:
            in_feat[chi].append(out_feat[idx])
    return out_feat[NODES[-1]]


if __name__ == "__main__":
    key = jax.random.PRNGKey(0)
    key, kx1, kx2 = jax.random.split(key, 3)
    params = init_params(key)

    # small latency-style batch
    batch = 8
    x1 = jax.random.normal(kx1, (batch, INPUT_DIM), jnp.float32)
    out1 = jax.block_until_ready(graph2nn_forward(x1, params))
    ref1 = graph2nn_reference(x1, params)
    np.testing.assert_allclose(np.asarray(out1), np.asarray(ref1),
                               rtol=1e-5, atol=1e-5)
    assert out1.shape == (batch, HIDDEN[4])

    # non-multiple-of-8 batch exercises the row-padding path
    batch2 = 20
    x2 = jax.random.normal(kx2, (batch2, INPUT_DIM), jnp.float32)
    out2 = jax.block_until_ready(graph2nn_forward(x2, params))
    ref2 = graph2nn_reference(x2, params)
    np.testing.assert_allclose(np.asarray(out2), np.asarray(ref2),
                               rtol=1e-5, atol=1e-5)
    assert out2.shape == (batch2, HIDDEN[4])

    print("KERNEL_OK")
</pallas_src>

<mosaic_0001>
module attributes {stable_mosaic.version = 11 : i64} {
  func.func @_fused_dag_kernel(%arg0: i32, %arg1: memref<8x16xf32, #tpu.memory_space<vmem>>, %arg2: memref<448x128xf32, #tpu.memory_space<vmem>>, %arg3: memref<8x8xf32, #tpu.memory_space<vmem>>, %arg4: memref<8x384xf32, #tpu.memory_space<vmem>>) attributes {dimension_semantics = [#tpu.dimension_semantics<parallel>], iteration_bounds = array<i64: 1>, scalar_prefetch = 0 : i64, scratch_operands = 1 : i64, tpu.core_type = #tpu.core_type<tc>, window_params = [{transform_indices = @transform_0, window_bounds = array<i64: 8, 16>}, {pipeline_mode = #tpu.pipeline_mode<synchronous>, transform_indices = @transform_1, window_bounds = array<i64: 448, 128>}, {transform_indices = @transform_2, window_bounds = array<i64: 8, 8>}]} {
    %c0 = arith.constant 0 : index
    %c0_0 = arith.constant 0 : index
    %0 = vector.load %arg1[%c0, %c0_0] : memref<8x16xf32, #tpu.memory_space<vmem>>, vector<8x16xf32>
    %c0_1 = arith.constant 0 : index
    %c0_2 = arith.constant 0 : index
    %1 = vector.load %arg2[%c0_1, %c0_2] : memref<448x128xf32, #tpu.memory_space<vmem>>, vector<16x128xf32>
    %cst = arith.constant dense<0.000000e+00> : vector<8x128xf32>
    %2 = tpu.matmul %0, %1, %cst {dimension_numbers = #tpu.dot_dimension_numbers<[1], [0], [0], [1], [0, 0, 1, 1], [], []>} : vector<8x16xf32>, vector<16x128xf32>, vector<8x128xf32> -> vector<8x128xf32>
    %c16 = arith.constant 16 : index
    %c0_3 = arith.constant 0 : index
    %3 = vector.load %arg2[%c16, %c0_3] : memref<448x128xf32, #tpu.memory_space<vmem>>, vector<1x128xf32>
    %4 = vector.broadcast %3 : vector<1x128xf32> to vector<8x128xf32>
    %5 = arith.addf %2, %4 : vector<8x128xf32>
    %cst_4 = arith.constant 0.000000e+00 : f32
    %6 = vector.broadcast %cst_4 : f32 to vector<8x128xf32>
    %7 = arith.maximumf %5, %6 : vector<8x128xf32>
    %c0_5 = arith.constant 0 : index
    %c0_6 = arith.constant 0 : index
    %8 = vector.load %arg4[%c0_5, %c0_6] : memref<8x384xf32, #tpu.memory_space<vmem>>, vector<8x128xf32>
    tpu.vector_store %arg4[%c0_5, %c0_6], %7 {strides = array<i32>} : memref<8x384xf32, #tpu.memory_space<vmem>>, vector<8x128xf32>,
    %c24 = arith.constant 24 : index
    %c0_7 = arith.constant 0 : index
    %9 = vector.load %arg2[%c24, %c0_7] : memref<448x128xf32, #tpu.memory_space<vmem>>, vector<16x128xf32>
    %cst_8 = arith.constant dense<0.000000e+00> : vector<8x128xf32>
    %10 = tpu.matmul %0, %9, %cst_8 {dimension_numbers = #tpu.dot_dimension_numbers<[1], [0], [0], [1], [0, 0, 1, 1], [], []>} : vector<8x16xf32>, vector<16x128xf32>, vector<8x128xf32> -> vector<8x128xf32>
    %c40 = arith.constant 40 : index
    %c0_9 = arith.constant 0 : index
    %11 = vector.load %arg2[%c40, %c0_9] : memref<448x128xf32, #tpu.memory_space<vmem>>, vector<1x128xf32>
    %12 = vector.broadcast %11 : vector<1x128xf32> to vector<8x128xf32>
    %13 = arith.addf %10, %12 : vector<8x128xf32>
    %14 = vector.extract_strided_slice %13 {offsets = [0, 0], sizes = [8, 32], strides = [1, 1]} : vector<8x128xf32> to vector<8x32xf32>
    %15 = math.tanh %14 : vector<8x32xf32>
    %c0_10 = arith.constant 0 : index
    %c128 = arith.constant 128 : index
    %16 = vector.load %arg4[%c0_10, %c128] : memref<8x384xf32, #tpu.memory_space<vmem>>, vector<8x32xf32>
    tpu.vector_store %arg4[%c0_10, %c128], %15 {strides = array<i32>} : memref<8x384xf32, #tpu.memory_space<vmem>>, vector<8x32xf32>,
    %cst_11 = arith.constant 0.000000e+00 : f32
    %17 = vector.broadcast %cst_11 : f32 to vector<8x96xf32>
    %c0_12 = arith.constant 0 : index
    %c160 = arith.constant 160 : index
    %18 = vector.load %arg4[%c0_12, %c160] : memref<8x384xf32, #tpu.memory_space<vmem>>, vector<8x96xf32>
    tpu.vector_store %arg4[%c0_12, %c160], %17 {strides = array<i32>} : memref<8x384xf32, #tpu.memory_space<vmem>>, vector<8x96xf32>,
    %c0_13 = arith.constant 0 : index
    %c0_14 = arith.constant 0 : index
    %19 = vector.load %arg4[%c0_13, %c0_14] : memref<8x384xf32, #tpu.memory_space<vmem>>, vector<8x256xf32>
    %c48 = arith.constant 48 : index
    %c0_15 = arith.constant 0 : index
    %20 = vector.load %arg2[%c48, %c0_15] : memref<448x128xf32, #tpu.memory_space<vmem>>, vector<256x128xf32>
    %cst_16 = arith.constant dense<0.000000e+00> : vector<8x128xf32>
    %21 = tpu.matmul %19, %20, %cst_16 {dimension_numbers = #tpu.dot_dimension_numbers<[1], [0], [0], [1], [0, 0, 1, 1], [], []>} : vector<8x256xf32>, vector<256x128xf32>, vector<8x128xf32> -> vector<8x128xf32>
    %c304 = arith.constant 304 : index
    %c0_17 = arith.constant 0 : index
    %22 = vector.load %arg2[%c304, %c0_17] : memref<448x128xf32, #tpu.memory_space<vmem>>, vector<1x128xf32>
    %23 = vector.broadcast %22 : vector<1x128xf32> to vector<8x128xf32>
    %24 = arith.addf %21, %23 : vector<8x128xf32>
    %cst_18 = arith.constant 0.000000e+00 : f32
    %25 = vector.broadcast %cst_18 : f32 to vector<8x128xf32>
    %26 = arith.maximumf %24, %25 : vector<8x128xf32>
    %c0_19 = arith.constant 0 : index
    %c256 = arith.constant 256 : index
    %27 = vector.load %arg4[%c0_19, %c256] : memref<8x384xf32, #tpu.memory_space<vmem>>, vector<8x128xf32>
    tpu.vector_store %arg4[%c0_19, %c256], %26 {strides = array<i32>} : memref<8x384xf32, #tpu.memory_space<vmem>>, vector<8x128xf32>,
    %c0_20 = arith.constant 0 : index
    %c256_21 = arith.constant 256 : index
    %28 = vector.load %arg4[%c0_20, %c256_21] : memref<8x384xf32, #tpu.memory_space<vmem>>, vector<8x128xf32>
    %c312 = arith.constant 312 : index
    %c0_22 = arith.constant 0 : index
    %29 = vector.load %arg2[%c312, %c0_22] : memref<448x128xf32, #tpu.memory_space<vmem>>, vector<128x128xf32>
    %cst_23 = arith.constant dense<0.000000e+00> : vector<8x128xf32>
    %30 = tpu.matmul %28, %29, %cst_23 {dimension_numbers = #tpu.dot_dimension_numbers<[1], [0], [0], [1], [0, 0, 1, 1], [], []>} : vector<8x128xf32>, vector<128x128xf32>, vector<8x128xf32> -> vector<8x128xf32>
    %c440 = arith.constant 440 : index
    %c0_24 = arith.constant 0 : index
    %31 = vector.load %arg2[%c440, %c0_24] : memref<448x128xf32, #tpu.memory_space<vmem>>, vector<1x128xf32>
    %32 = vector.broadcast %31 : vector<1x128xf32> to vector<8x128xf32>
    %33 = arith.addf %30, %32 : vector<8x128xf32>
    %34 = vector.extract_strided_slice %33 {offsets = [0, 0], sizes = [8, 8], strides = [1, 1]} : vector<8x128xf32> to vector<8x8xf32>
    %c0_25 = arith.constant 0 : index
    %c0_26 = arith.constant 0 : index
    %35 = vector.load %arg3[%c0_25, %c0_26] : memref<8x8xf32, #tpu.memory_space<vmem>>, vector<8x8xf32>
    tpu.vector_store %arg3[%c0_25, %c0_26], %34 {strides = array<i32>} : memref<8x8xf32, #tpu.memory_space<vmem>>, vector<8x8xf32>,
    return
  }
  func.func @transform_0(%arg0: i32) -> (i32, i32) {
    %c0_i32 = arith.constant 0 : i32
    %c0_i32_0 = arith.constant 0 : i32
    return %arg0, %c0_i32 : i32, i32
  }
  func.func @transform_1(%arg0: i32) -> (i32, i32) {
    %c0_i32 = arith.constant 0 : i32
    %c0_i32_0 = arith.constant 0 : i32
    %c0_i32_1 = arith.constant 0 : i32
    return %c0_i32, %c0_i32_0 : i32, i32
  }
  func.func @transform_2(%arg0: i32) -> (i32, i32) {
    %c0_i32 = arith.constant 0 : i32
    %c0_i32_0 = arith.constant 0 : i32
    return %arg0, %c0_i32 : i32, i32
  }
}

</mosaic_0001>

<llo_original>
// kernel: tpu_custom_call.1
$region0: #{tpu_custom_call.1}
  #allocation0 [shape = 'u32[]', space=smem, size = 0x4, offset = 0x4, fixed_abs, tag = 'smem constant byte address 0x4 - core index']
  #allocation1 [shape = 'u32[144,128]{1,0:T(1,128)}', space=vmem, size = 0x12000, scoped, tag = 'internal scratch']
  #allocation2 [shape = 'f32[8,384]{1,0:T(8,128)}', space=vmem, size = 0x3000, scoped, tag = 'scratch operand']
  %s0 = inlined_call_operand.hbm [shape: f32[8,16], index: 0, kind: input, shape index: {}]
  %s1 = inlined_call_operand.hbm [shape: f32[448,128], index: 1, kind: input, shape index: {}]
  %s2 = inlined_call_operand.hbm [shape: f32[8,8], index: 2, kind: output, shape index: {}]
  %s3 = sld [smem:[#allocation0]]
  $region26: #{tpu_custom_call.1} parent=0
    _
  %s5 = ssub.s32 1, %s3
  %s6 = scalar_select 0, %s5, %s3
  $region1: #{tpu_custom_call.1} parent=0
    #allocation3 [shape = 'u8[4096]{0}', space=vmem, size = 0x1000, scoped, tag = 'input window, operand 0, single buffered']
    #allocation4 [shape = 's32[1]{0}', space=sflag, size = 0x4, scoped, tag = 'scoped memory for tpu_custom_call.1']
    #allocation5 [shape = 's32[1]{0}', space=sflag, size = 0x4, scoped, tag = 'scoped memory for tpu_custom_call.1']
    #allocation6 [shape = 'u8[229376]{0}', space=vmem, size = 0x38000, scoped, tag = 'input window, operand 1, single buffered']
    #allocation7 [shape = 's32[1]{0}', space=sflag, size = 0x4, scoped, tag = 'scoped memory for tpu_custom_call.1']
    #allocation8 [shape = 'u8[4096]{0}', space=vmem, size = 0x1000, scoped, tag = 'output window, operand 0, single buffered']
    %7 = vsyncpa [#allocation4], 0
    %8 = vsyncpa [#allocation7], 0
    %9 = vsyncpa [#allocation5], 0
    // Predicated region
    $region2: #{tpu_custom_call.1} parent=1 // pred_check
      _
    $region3: #{tpu_custom_call.1} parent=1 // pred_check_branch
      %11 = sbr.rel (0) target = $region5
    $region4: #{tpu_custom_call.1} parent=1 // pred_region
      %s13 = ssub.s32 128, 128
      %14 = vsyncadd [#allocation4], %s13
      %s16 = sshll.u32 [#allocation3], 4
      %s17 = int_to_ptr.vmem [resolvable:$true] %s16
      %19 = dma.hbm_to_vmem [thread:$0]  %s0, 128, %s17, [#allocation4]
    $region5: #{tpu_custom_call.1} parent=1 // pred_fallthru
      _
    // Predicated region
    $region6: #{tpu_custom_call.1} parent=1 // pred_check
      _
    $region7: #{tpu_custom_call.1} parent=1 // pred_check_branch
      %21 = sbr.rel (0) target = $region9
    $region8: #{tpu_custom_call.1} parent=1 // pred_region
      %s23 = ssub.s32 7168, 7168
      %24 = vsyncadd [#allocation7], %s23
      %s25 = sshll.u32 [#allocation6], 4
      %s26 = int_to_ptr.vmem [resolvable:$true] %s25
      %31 = dma.hbm_to_vmem [thread:$0]  %s1, 7168, %s26, [#allocation7], 128, 128, 8
    $region9: #{tpu_custom_call.1} parent=1 // pred_fallthru
      _
    // Predicated region
    $region10: #{tpu_custom_call.1} parent=1 // pred_check
      _
    $region11: #{tpu_custom_call.1} parent=1 // pred_check_branch
      %33 = sbr.rel (0) target = $region13
    $region12: #{tpu_custom_call.1} parent=1 // pred_region
      %34 = dma.done [#allocation4], 128
    $region13: #{tpu_custom_call.1} parent=1 // pred_fallthru
      _
    // Predicated region
    $region14: #{tpu_custom_call.1} parent=1 // pred_check
      _
    $region15: #{tpu_custom_call.1} parent=1 // pred_check_branch
      %36 = sbr.rel (0) target = $region17
    $region16: #{tpu_custom_call.1} parent=1 // pred_region
      %37 = dma.done [#allocation7], 7168
    $region17: #{tpu_custom_call.1} parent=1 // pred_fallthru
      _
    %v38 = vld [vmem:[#allocation3] sm:$0xff]
    %v39 = vld [vmem:[#allocation6] sm:$0xff]
    %v40 = vld [vmem:[#allocation6 + $0x8] sm:$0xff]
    %v41 = vld [vmem:[#allocation6 + $0x10] sm:$0x1]
    %v42 = vlaneseq
    %v43 = vshrl.u32 %v42, 7
    %v44 = vsub.s32 0, %v43
    %v45 = vrot.slane %v41, %v44
    %vm46 = vcmask 130048
    %v48 = vsel %vm46, %v38, 0
    %50 = vmatprep.subr.mxu0 0.0
    %51 = vmatpush1.msra.mxu0 %v39
    %52 = vmatprep.subr.mxu0 0.0
    %53 = vmatpush1.msra.mxu0 %v40
    %54 = vmatprep.subr.mxu0 0.0
    %55 = vmatpush1.msra.mxu0 0.0
    %56 = vmatprep.subr.mxu0 0.0
    %57 = vmatpush1.msra.mxu0 0.0
    %58 = vmatprep.subr.mxu0 0.0
    %59 = vmatpush1.msra.mxu0 0.0
    %60 = vmatprep.subr.mxu0 0.0
    %61 = vmatpush1.msra.mxu0 0.0
    %62 = vmatprep.subr.mxu0 0.0
    %63 = vmatpush1.msra.mxu0 0.0
    %64 = vmatprep.subr.mxu0 0.0
    %65 = vmatpush1.msra.mxu0 0.0
    %66 = vmatprep.subr.mxu0 0.0
    %67 = vmatpush1.msra.mxu0 0.0
    %68 = vmatprep.subr.mxu0 0.0
    %69 = vmatpush1.msra.mxu0 0.0
    %70 = vmatprep.subr.mxu0 0.0
    %71 = vmatpush1.msra.mxu0 0.0
    %72 = vmatprep.subr.mxu0 0.0
    %73 = vmatpush1.msra.mxu0 0.0
    %74 = vmatprep.subr.mxu0 0.0
    %75 = vmatpush1.msra.mxu0 0.0
    %76 = vmatprep.subr.mxu0 0.0
    %77 = vmatpush1.msra.mxu0 0.0
    %78 = vmatprep.subr.mxu0 0.0
    %79 = vmatpush1.msra.mxu0 0.0
    %80 = vmatprep.subr.mxu0 0.0
    %81 = vmatpush1.msra.mxu0 0.0
    %82 = vmatprep.subr.mxu0 0.0
    %83 = vmatpush1.msra.mxu0 0.0
    %84 = vmatprep.subr.mxu0 0.0
    %85 = vmatpush1.msra.mxu0 0.0
    %86 = vmatprep.subr.mxu0 0.0
    %87 = vmatpush1.msra.mxu0 0.0
    %88 = vmatprep.subr.mxu0 0.0
    %89 = vmatpush1.msra.mxu0 0.0
    %90 = vmatprep.subr.mxu0 0.0
    %91 = vmatpush1.msra.mxu0 0.0
    %92 = vmatprep.subr.mxu0 0.0
    %93 = vmatpush1.msra.mxu0 0.0
    %94 = vmatprep.subr.mxu0 0.0
    %95 = vmatpush1.msra.mxu0 0.0
    %96 = vmatprep.subr.mxu0 0.0
    %97 = vmatpush1.msra.mxu0 0.0
    %98 = vmatprep.subr.mxu0 0.0
    %99 = vmatpush1.msra.mxu0 0.0
    %100 = vmatprep.subr.mxu0 0.0
    %101 = vmatpush1.msra.mxu0 0.0
    %102 = vmatprep.subr.mxu0 0.0
    %103 = vmatpush1.msra.mxu0 0.0
    %104 = vmatprep.subr.mxu0 0.0
    %105 = vmatpush1.msra.mxu0 0.0
    %106 = vmatprep.subr.mxu0 0.0
    %107 = vmatpush1.msra.mxu0 0.0
    %108 = vmatprep.subr.mxu0 0.0
    %109 = vmatpush1.msra.mxu0 0.0
    %110 = vmatprep.subr.mxu0 0.0
    %111 = vmatpush1.msra.mxu0 0.0
    %112 = vmatprep.subr.mxu0 0.0
    %113 = vmatpush1.msra.mxu0 0.0
    %114 = vmatprep.mubr.f32.mxu0 0.0
    %115 = vmatmul.mubr.f32.gmra.mrb[0].mxu0 %v48
    %v116 = vpop.f32.mrb[0].mxu0
    %v117 = vadd.f32 %v45, %v116
    %v118 = vpop.f32.mrb[0].mxu0
    %119 = vdwg.mxu0
    %v120 = vmax.f32 %v117, 0.0
    %121 = vst [vmem:[#allocation2] sm:$0xff] %v120
    %v122 = vld [vmem:[#allocation6 + $0x18] sm:$0xff]
    %v123 = vld [vmem:[#allocation6 + $0x20] sm:$0xff]
    %v124 = vld [vmem:[#allocation6 + $0x28] sm:$0x1]
    %v125 = vlaneseq
    %v126 = vshrl.u32 %v125, 7
    %v127 = vsub.s32 0, %v126
    %v128 = vrot.slane %v124, %v127
    %129 = vmatprep.subr.mxu0 0.0
    %130 = vmatpush1.msra.mxu0 %v122
    %131 = vmatprep.subr.mxu0 0.0
    %132 = vmatpush1.msra.mxu0 %v123
    %133 = vmatprep.subr.mxu0 0.0
    %134 = vmatpush1.msra.mxu0 0.0
    %135 = vmatprep.subr.mxu0 0.0
    %136 = vmatpush1.msra.mxu0 0.0
    %137 = vmatprep.subr.mxu0 0.0
    %138 = vmatpush1.msra.mxu0 0.0
    %139 = vmatprep.subr.mxu0 0.0
    %140 = vmatpush1.msra.mxu0 0.0
    %141 = vmatprep.subr.mxu0 0.0
    %142 = vmatpush1.msra.mxu0 0.0
    %143 = vmatprep.subr.mxu0 0.0
    %144 = vmatpush1.msra.mxu0 0.0
    %145 = vmatprep.subr.mxu0 0.0
    %146 = vmatpush1.msra.mxu0 0.0
    %147 = vmatprep.subr.mxu0 0.0
    %148 = vmatpush1.msra.mxu0 0.0
    %149 = vmatprep.subr.mxu0 0.0
    %150 = vmatpush1.msra.mxu0 0.0
    %151 = vmatprep.subr.mxu0 0.0
    %152 = vmatpush1.msra.mxu0 0.0
    %153 = vmatprep.subr.mxu0 0.0
    %154 = vmatpush1.msra.mxu0 0.0
    %155 = vmatprep.subr.mxu0 0.0
    %156 = vmatpush1.msra.mxu0 0.0
    %157 = vmatprep.subr.mxu0 0.0
    %158 = vmatpush1.msra.mxu0 0.0
    %159 = vmatprep.subr.mxu0 0.0
    %160 = vmatpush1.msra.mxu0 0.0
    %161 = vmatprep.subr.mxu0 0.0
    %162 = vmatpush1.msra.mxu0 0.0
    %163 = vmatprep.subr.mxu0 0.0
    %164 = vmatpush1.msra.mxu0 0.0
    %165 = vmatprep.subr.mxu0 0.0
    %166 = vmatpush1.msra.mxu0 0.0
    %167 = vmatprep.subr.mxu0 0.0
    %168 = vmatpush1.msra.mxu0 0.0
    %169 = vmatprep.subr.mxu0 0.0
    %170 = vmatpush1.msra.mxu0 0.0
    %171 = vmatprep.subr.mxu0 0.0
    %172 = vmatpush1.msra.mxu0 0.0
    %173 = vmatprep.subr.mxu0 0.0
    %174 = vmatpush1.msra.mxu0 0.0
    %175 = vmatprep.subr.mxu0 0.0
    %176 = vmatpush1.msra.mxu0 0.0
    %177 = vmatprep.subr.mxu0 0.0
    %178 = vmatpush1.msra.mxu0 0.0
    %179 = vmatprep.subr.mxu0 0.0
    %180 = vmatpush1.msra.mxu0 0.0
    %181 = vmatprep.subr.mxu0 0.0
    %182 = vmatpush1.msra.mxu0 0.0
    %183 = vmatprep.subr.mxu0 0.0
    %184 = vmatpush1.msra.mxu0 0.0
    %185 = vmatprep.subr.mxu0 0.0
    %186 = vmatpush1.msra.mxu0 0.0
    %187 = vmatprep.subr.mxu0 0.0
    %188 = vmatpush1.msra.mxu0 0.0
    %189 = vmatprep.subr.mxu0 0.0
    %190 = vmatpush1.msra.mxu0 0.0
    %191 = vmatprep.subr.mxu0 0.0
    %192 = vmatpush1.msra.mxu0 0.0
    %193 = vmatprep.mubr.f32.mxu0 0.0
    %194 = vmatmul.mubr.f32.gmra.mrb[0].mxu0 %v48
    %v195 = vpop.f32.mrb[0].mxu0
    %v196 = vadd.f32 %v128, %v195
    %v197 = vpop.f32.mrb[0].mxu0
    %198 = vdwg.mxu0
    %v199 = vtanh.pop %v196
    %vm200 = vcmask 261120
    %201 = vst.msk [vmem:[#allocation2 + $0x8] sm:$0xff] %vm200, %v199
    %vm202 = vcmask 1047808
    %203 = vst.msk [vmem:[#allocation2 + $0x8] sm:$0xff] %vm202, 0.0
    %v204 = vld [vmem:[#allocation2] sm:$0xff]
    %v205 = vld [vmem:[#allocation2 + $0x8] sm:$0xff]
    %v206 = vld [vmem:[#allocation6 + $0x30] sm:$0xff]
    %v207 = vld [vmem:[#allocation6 + $0x38] sm:$0xff]
    %v208 = vld [vmem:[#allocation6 + $0x40] sm:$0xff]
    %v209 = vld [vmem:[#allocation6 + $0x48] sm:$0xff]
    %v210 = vld [vmem:[#allocation6 + $0x50] sm:$0xff]
    %v211 = vld [vmem:[#allocation6 + $0x58] sm:$0xff]
    %v212 = vld [vmem:[#allocation6 + $0x60] sm:$0xff]
    %v213 = vld [vmem:[#allocation6 + $0x68] sm:$0xff]
    %v214 = vld [vmem:[#allocation6 + $0x70] sm:$0xff]
    %v215 = vld [vmem:[#allocation6 + $0x78] sm:$0xff]
    %v216 = vld [vmem:[#allocation6 + $0x80] sm:$0xff]
    %v217 = vld [vmem:[#allocation6 + $0x88] sm:$0xff]
    %v218 = vld [vmem:[#allocation6 + $0x90] sm:$0xff]
    %v219 = vld [vmem:[#allocation6 + $0x98] sm:$0xff]
    %v220 = vld [vmem:[#allocation6 + $0xa0] sm:$0xff]
    %v221 = vld [vmem:[#allocation6 + $0xa8] sm:$0xff]
    %v222 = vld [vmem:[#allocation6 + $0xb0] sm:$0xff]
    %v223 = vld [vmem:[#allocation6 + $0xb8] sm:$0xff]
    %v224 = vld [vmem:[#allocation6 + $0xc0] sm:$0xff]
    %v225 = vld [vmem:[#allocation6 + $0xc8] sm:$0xff]
    %v226 = vld [vmem:[#allocation6 + $0xd0] sm:$0xff]
    %v227 = vld [vmem:[#allocation6 + $0xd8] sm:$0xff]
    %v228 = vld [vmem:[#allocation6 + $0xe0] sm:$0xff]
    %v229 = vld [vmem:[#allocation6 + $0xe8] sm:$0xff]
    %v230 = vld [vmem:[#allocation6 + $0xf0] sm:$0xff]
    %v231 = vld [vmem:[#allocation6 + $0xf8] sm:$0xff]
    %v232 = vld [vmem:[#allocation6 + $0x100] sm:$0xff]
    %v233 = vld [vmem:[#allocation6 + $0x108] sm:$0xff]
    %v234 = vld [vmem:[#allocation6 + $0x110] sm:$0xff]
    %v235 = vld [vmem:[#allocation6 + $0x118] sm:$0xff]
    %v236 = vld [vmem:[#allocation6 + $0x120] sm:$0xff]
    %v237 = vld [vmem:[#allocation6 + $0x128] sm:$0xff]
    %v238 = vld [vmem:[#allocation6 + $0x130] sm:$0x1]
    %v239 = vlaneseq
    %v240 = vshrl.u32 %v239, 7
    %v241 = vsub.s32 0, %v240
    %v242 = vrot.slane %v238, %v241
    %243 = vmatprep.subr.mxu0 0.0
    %244 = vmatpush1.msra.mxu0 %v206
    %245 = vmatprep.subr.mxu0 0.0
    %246 = vmatpush1.msra.mxu0 %v207
    %247 = vmatprep.subr.mxu0 0.0
    %248 = vmatpush1.msra.mxu0 %v208
    %249 = vmatprep.subr.mxu0 0.0
    %250 = vmatpush1.msra.mxu0 %v209
    %251 = vmatprep.subr.mxu0 0.0
    %252 = vmatpush1.msra.mxu0 %v210
    %253 = vmatprep.subr.mxu0 0.0
    %254 = vmatpush1.msra.mxu0 %v211
    %255 = vmatprep.subr.mxu0 0.0
    %256 = vmatpush1.msra.mxu0 %v212
    %257 = vmatprep.subr.mxu0 0.0
    %258 = vmatpush1.msra.mxu0 %v213
    %259 = vmatprep.subr.mxu0 0.0
    %260 = vmatpush1.msra.mxu0 %v214
    %261 = vmatprep.subr.mxu0 0.0
    %262 = vmatpush1.msra.mxu0 %v215
    %263 = vmatprep.subr.mxu0 0.0
    %264 = vmatpush1.msra.mxu0 %v216
    %265 = vmatprep.subr.mxu0 0.0
    %266 = vmatpush1.msra.mxu0 %v217
    %267 = vmatprep.subr.mxu0 0.0
    %268 = vmatpush1.msra.mxu0 %v218
    %269 = vmatprep.subr.mxu0 0.0
    %270 = vmatpush1.msra.mxu0 %v219
    %271 = vmatprep.subr.mxu0 0.0
    %272 = vmatpush1.msra.mxu0 %v220
    %273 = vmatprep.subr.mxu0 0.0
    %274 = vmatpush1.msra.mxu0 %v221
    %275 = vmatprep.subr.mxu0 0.0
    %276 = vmatpush1.msra.mxu0 %v222
    %277 = vmatprep.subr.mxu0 0.0
    %278 = vmatpush1.msra.mxu0 %v223
    %279 = vmatprep.subr.mxu0 0.0
    %280 = vmatpush1.msra.mxu0 %v224
    %281 = vmatprep.subr.mxu0 0.0
    %282 = vmatpush1.msra.mxu0 %v225
    %283 = vmatprep.subr.mxu0 0.0
    %284 = vmatpush1.msra.mxu0 %v226
    %285 = vmatprep.subr.mxu0 0.0
    %286 = vmatpush1.msra.mxu0 %v227
    %287 = vmatprep.subr.mxu0 0.0
    %288 = vmatpush1.msra.mxu0 %v228
    %289 = vmatprep.subr.mxu0 0.0
    %290 = vmatpush1.msra.mxu0 %v229
    %291 = vmatprep.subr.mxu0 0.0
    %292 = vmatpush1.msra.mxu0 %v230
    %293 = vmatprep.subr.mxu0 0.0
    %294 = vmatpush1.msra.mxu0 %v231
    %295 = vmatprep.subr.mxu0 0.0
    %296 = vmatpush1.msra.mxu0 %v232
    %297 = vmatprep.subr.mxu0 0.0
    %298 = vmatpush1.msra.mxu0 %v233
    %299 = vmatprep.subr.mxu0 0.0
    %300 = vmatpush1.msra.mxu0 %v234
    %301 = vmatprep.subr.mxu0 0.0
    %302 = vmatpush1.msra.mxu0 %v235
    %303 = vmatprep.subr.mxu0 0.0
    %304 = vmatpush1.msra.mxu0 %v236
    %305 = vmatprep.subr.mxu0 0.0
    %306 = vmatpush1.msra.mxu0 %v237
    %307 = vmatprep.mubr.f32.mxu0 %v205
    %308 = vmatmul.mubr.f32.gmra.mrb[0].mxu0 %v204
    %v309 = vpop.f32.mrb[0].mxu0
    %v310 = vadd.f32 %v242, %v309
    %v311 = vpop.f32.mrb[0].mxu0
    %312 = vdwg.mxu0
    %v313 = vmax.f32 %v310, 0.0
    %314 = vst [vmem:[#allocation2 + $0x10] sm:$0xff] %v313
    %v315 = vld [vmem:[#allocation2 + $0x10] sm:$0xff]
    %v316 = vld [vmem:[#allocation6 + $0x138] sm:$0xff]
    %v317 = vld [vmem:[#allocation6 + $0x140] sm:$0xff]
    %v318 = vld [vmem:[#allocation6 + $0x148] sm:$0xff]
    %v319 = vld [vmem:[#allocation6 + $0x150] sm:$0xff]
    %v320 = vld [vmem:[#allocation6 + $0x158] sm:$0xff]
    %v321 = vld [vmem:[#allocation6 + $0x160] sm:$0xff]
    %v322 = vld [vmem:[#allocation6 + $0x168] sm:$0xff]
    %v323 = vld [vmem:[#allocation6 + $0x170] sm:$0xff]
    %v324 = vld [vmem:[#allocation6 + $0x178] sm:$0xff]
    %v325 = vld [vmem:[#allocation6 + $0x180] sm:$0xff]
    %v326 = vld [vmem:[#allocation6 + $0x188] sm:$0xff]
    %v327 = vld [vmem:[#allocation6 + $0x190] sm:$0xff]
    %v328 = vld [vmem:[#allocation6 + $0x198] sm:$0xff]
    %v329 = vld [vmem:[#allocation6 + $0x1a0] sm:$0xff]
    %v330 = vld [vmem:[#allocation6 + $0x1a8] sm:$0xff]
    %v331 = vld [vmem:[#allocation6 + $0x1b0] sm:$0xff]
    %v332 = vld [vmem:[#allocation6 + $0x1b8] sm:$0x1]
    %v333 = vlaneseq
    %v334 = vshrl.u32 %v333, 7
    %v335 = vsub.s32 0, %v334
    %v336 = vrot.slane %v332, %v335
    %337 = vmatprep.subr.mxu0 0.0
    %338 = vmatpush1.msra.mxu0 %v316
    %339 = vmatprep.subr.mxu0 0.0
    %340 = vmatpush1.msra.mxu0 %v317
    %341 = vmatprep.subr.mxu0 0.0
    %342 = vmatpush1.msra.mxu0 %v318
    %343 = vmatprep.subr.mxu0 0.0
    %344 = vmatpush1.msra.mxu0 %v319
    %345 = vmatprep.subr.mxu0 0.0
    %346 = vmatpush1.msra.mxu0 %v320
    %347 = vmatprep.subr.mxu0 0.0
    %348 = vmatpush1.msra.mxu0 %v321
    %349 = vmatprep.subr.mxu0 0.0
    %350 = vmatpush1.msra.mxu0 %v322
    %351 = vmatprep.subr.mxu0 0.0
    %352 = vmatpush1.msra.mxu0 %v323
    %353 = vmatprep.subr.mxu0 0.0
    %354 = vmatpush1.msra.mxu0 %v324
    %355 = vmatprep.subr.mxu0 0.0
    %356 = vmatpush1.msra.mxu0 %v325
    %357 = vmatprep.subr.mxu0 0.0
    %358 = vmatpush1.msra.mxu0 %v326
    %359 = vmatprep.subr.mxu0 0.0
    %360 = vmatpush1.msra.mxu0 %v327
    %361 = vmatprep.subr.mxu0 0.0
    %362 = vmatpush1.msra.mxu0 %v328
    %363 = vmatprep.subr.mxu0 0.0
    %364 = vmatpush1.msra.mxu0 %v329
    %365 = vmatprep.subr.mxu0 0.0
    %366 = vmatpush1.msra.mxu0 %v330
    %367 = vmatprep.subr.mxu0 0.0
    %368 = vmatpush1.msra.mxu0 %v331
    %369 = vmatprep.subr.mxu0 0.0
    %370 = vmatpush1.msra.mxu0 0.0
    %371 = vmatprep.subr.mxu0 0.0
    %372 = vmatpush1.msra.mxu0 0.0
    %373 = vmatprep.subr.mxu0 0.0
    %374 = vmatpush1.msra.mxu0 0.0
    %375 = vmatprep.subr.mxu0 0.0
    %376 = vmatpush1.msra.mxu0 0.0
    %377 = vmatprep.subr.mxu0 0.0
    %378 = vmatpush1.msra.mxu0 0.0
    %379 = vmatprep.subr.mxu0 0.0
    %380 = vmatpush1.msra.mxu0 0.0
    %381 = vmatprep.subr.mxu0 0.0
    %382 = vmatpush1.msra.mxu0 0.0
    %383 = vmatprep.subr.mxu0 0.0
    %384 = vmatpush1.msra.mxu0 0.0
    %385 = vmatprep.subr.mxu0 0.0
    %386 = vmatpush1.msra.mxu0 0.0
    %387 = vmatprep.subr.mxu0 0.0
    %388 = vmatpush1.msra.mxu0 0.0
    %389 = vmatprep.subr.mxu0 0.0
    %390 = vmatpush1.msra.mxu0 0.0
    %391 = vmatprep.subr.mxu0 0.0
    %392 = vmatpush1.msra.mxu0 0.0
    %393 = vmatprep.subr.mxu0 0.0
    %394 = vmatpush1.msra.mxu0 0.0
    %395 = vmatprep.subr.mxu0 0.0
    %396 = vmatpush1.msra.mxu0 0.0
    %397 = vmatprep.subr.mxu0 0.0
    %398 = vmatpush1.msra.mxu0 0.0
    %399 = vmatprep.subr.mxu0 0.0
    %400 = vmatpush1.msra.mxu0 0.0
    %401 = vmatprep.mubr.f32.mxu0 0.0
    %402 = vmatmul.mubr.f32.gmra.mrb[0].mxu0 %v315
    %v403 = vpop.f32.mrb[0].mxu0
    %v404 = vadd.f32 %v336, %v403
    %v405 = vpop.f32.mrb[0].mxu0
    %406 = vdwg.mxu0
    %vm407 = vcmask 64512
    %408 = vst.msk [vmem:[#allocation8] sm:$0xff] %vm407, %v404
    // Predicated region
    $region18: #{tpu_custom_call.1} parent=1 // pred_check
      _
    $region19: #{tpu_custom_call.1} parent=1 // pred_check_branch
      %410 = sbr.rel (0) target = $region21
    $region20: #{tpu_custom_call.1} parent=1 // pred_region
      %s412 = ssub.s32 128, 128
      %413 = vsyncadd [#allocation5], %s412
      %s415 = sshll.u32 [#allocation8], 4
      %s416 = int_to_ptr.vmem [resolvable:$true] %s415
      %418 = dma.vmem_to_hbm [thread:$0]  %s416, 128, %s2, [#allocation5]
    $region21: #{tpu_custom_call.1} parent=1 // pred_fallthru
      _
    // Predicated region
    $region22: #{tpu_custom_call.1} parent=1 // pred_check
      _
    $region23: #{tpu_custom_call.1} parent=1 // pred_check_branch
      %420 = sbr.rel (0) target = $region25
    $region24: #{tpu_custom_call.1} parent=1 // pred_region
      %421 = dma.done [#allocation5], 128
    $region25: #{tpu_custom_call.1} parent=1 // pred_fallthru
      _
    %422 = vsyncpa [#allocation4], 1
    %423 = vsyncpa [#allocation7], 1
    %424 = vsyncpa [#allocation5], 1

</llo_original>
